<compile_context>
chip_gen: v5e
topology: v5e:2x2
jax: 0.10.0
libtpu: 0.0.40
codegen_flags: <defaults>
</compile_context>

<pallas_src>
import math
import numpy as np
import jax
import jax.numpy as jnp
from jax.experimental import pallas as pl
from jax.experimental.pallas import tpu as pltpu


# ----------------------------------------------------------------------------
# Host-side index-table construction (output size depends on concrete obj_num,
# exactly like the dynamic-shape PyTorch forward).
# ----------------------------------------------------------------------------
def _build_pair_entries(obj_num):
    """entries[k] = (src_a, src_b, src_u) for unordered pair k, in the exact
    order the PyTorch module emits pairs (per image, o1 ascending, o2 > o1)."""
    entries = []
    begin = 0
    for n in np.asarray(obj_num).astype(np.int64):
        n = int(n)
        if n > 1:
            obj_base = begin
            union_base = begin + n
            cur_union = 0
            for o1 in range(n):
                for o2 in range(o1 + 1, n):
                    entries.append(
                        (obj_base + o1, obj_base + o2, union_base + cur_union)
                    )
                    cur_union += 1
        begin += n * (n + 1) // 2          # each image contributes n(n+1)/2 rows
    return entries


# ----------------------------------------------------------------------------
# Pallas kernel: DMA-gather source rows directly into the pipelined output
# block; build the reversed ordering in VMEM; Pallas writes the slab back.
# ----------------------------------------------------------------------------
def _make_pair_gather_kernel(pairs_per_step, rows_per_pair, isex):
    G = pairs_per_step

    def kernel(tbl_ref, feats_hbm, o_ref, rsem):
        # tbl_ref  : SMEM int32 [3 * NP_pad]        (a, b, u) per unordered pair
        # feats_hbm: HBM  [M, D]                    (memory_space=pl.ANY)
        # o_ref    : VMEM [G * rows_per_pair, D]    output slab for this step
        # rsem     : single DMA semaphore shared by all reads of this step
        base = 3 * G * pl.program_id(0)

        # ---- Phase 1: launch every source-row read straight into the forward
        #      (a, b, u) rows of the output block (no staging buffer). --------
        copies = []
        for k in range(G):
            row0 = rows_per_pair * k
            for t in range(3):
                src = tbl_ref[base + 3 * k + t]
                cp = pltpu.make_async_copy(
                    feats_hbm.at[pl.ds(src, 1)],        # (1, D) HBM source row
                    o_ref.at[pl.ds(row0 + t, 1)],       # (1, D) output-slab row
                    rsem,
                )
                cp.start()
                copies.append(cp)

        # ---- Phase 2: drain all reads.  One shared semaphore => every wait
        #      must be issued before ANY gathered row is consumed. ------------
        for cp in copies:
            cp.wait()

        # ---- Phase 3 (isex): build reversed (b, a, u) rows right next to the
        #      forward ones with in-VMEM row copies.  Pallas then writes the
        #      whole slab back to HBM as one contiguous, double-buffered DMA. -
        if isex:
            for k in range(G):
                r = rows_per_pair * k
                o_ref[pl.ds(r + 3, 1), :] = o_ref[pl.ds(r + 1, 1), :]   # b
                o_ref[pl.ds(r + 4, 1), :] = o_ref[pl.ds(r + 0, 1), :]   # a
                o_ref[pl.ds(r + 5, 1), :] = o_ref[pl.ds(r + 2, 1), :]   # u

    return kernel


# ----------------------------------------------------------------------------
# ObjectPairLayer forward
# ----------------------------------------------------------------------------
def object_pair_layer(roi_pooled_feats, obj_num, isex):
    """roi_pooled_feats: [M, C, H, W]  ->  [P, 3, C, H, W] (P = ordered pairs)."""
    M, C, H, W = roi_pooled_feats.shape
    D = C * H * W

    entries = _build_pair_entries(obj_num)
    NP = len(entries)                          # unordered pairs
    R = 2 if isex else 1                       # ordered pairs per unordered pair
    P = NP * R
    if NP == 0:
        return jnp.zeros((0, 3, C, H, W), roi_pooled_feats.dtype)

    rows_per_pair = 3 * R                      # flattened output rows per pair
    itemsize = jnp.dtype(roi_pooled_feats.dtype).itemsize
    pair_bytes = rows_per_pair * D * itemsize

    # Pairs per grid step: ~4 MiB of output per step (amortizes per-step
    # pipeline overhead, keeps DMAs in flight) while the double-buffered slab
    # stays <= 8 MiB (safe on v7x's 64 MiB VMEM and under the 32 MiB limit set
    # below).  Cap at 64 so the fully-unrolled body stays small.
    STEP_BYTES = 4 * 1024 * 1024
    G = int(max(1, min(STEP_BYTES // pair_bytes, 64)))
    if G < NP:
        # Multi-step: the block's sublane dim (G * rows_per_pair) must be a
        # multiple of 8.
        g_align = 8 // math.gcd(rows_per_pair, 8)
        G = max(g_align, (G // g_align) * g_align)
        NP_pad = -(-NP // G) * G
    else:
        G = NP                                 # single step: block == full array
        NP_pad = NP

    # Pad by replicating the last real pair; padded pairs write only to padded
    # output rows (>= P*3), which are sliced off below.
    padded = entries + [entries[-1]] * (NP_pad - NP)
    tbl = np.asarray(padded, dtype=np.int32).reshape(-1)        # [3 * NP_pad]

    feats2d = roi_pooled_feats.reshape(M, D)
    rows_per_step = G * rows_per_pair

    kernel = _make_pair_gather_kernel(G, rows_per_pair, isex)
    out_flat = pl.pallas_call(
        kernel,
        out_shape=jax.ShapeDtypeStruct((NP_pad * rows_per_pair, D), feats2d.dtype),
        grid_spec=pltpu.PrefetchScalarGridSpec(
            num_scalar_prefetch=1,
            grid=(NP_pad // G,),
            in_specs=[pl.BlockSpec(memory_space=pl.ANY)],       # feats stay in HBM
            out_specs=pl.BlockSpec((rows_per_step, D), lambda i, tbl: (i, 0)),
            scratch_shapes=[pltpu.SemaphoreType.DMA(())],       # shared read sem
        ),
        compiler_params=pltpu.CompilerParams(
            dimension_semantics=("parallel",),                  # steps independent
            vmem_limit_bytes=32 * 1024 * 1024,                  # lift v5e default
        ),
    )(jnp.asarray(tbl), feats2d)

    return out_flat[: P * 3].reshape(P, 3, C, H, W)


# ----------------------------------------------------------------------------
# Pure-numpy reference for verification
# ----------------------------------------------------------------------------
def reference_object_pair(feats, obj_num, isex):
    entries = _build_pair_entries(obj_num)
    R = 2 if isex else 1
    P = len(entries) * R
    if P == 0:
        return np.zeros((0, 3) + feats.shape[1:], feats.dtype)
    idx = np.zeros((P, 3), np.int64)
    for k, (a, b, u) in enumerate(entries):
        idx[k * R] = (a, b, u)
        if isex:
            idx[k * R + 1] = (b, a, u)
    return feats[idx]                                           # [P, 3, C, H, W]


# ----------------------------------------------------------------------------
if __name__ == "__main__":
    key = jax.random.PRNGKey(0)

    # Two images with 3 and 2 objects -> per-image rows n(n+1)/2 = 6 + 3 = 9.
    obj_num = np.array([3, 2], dtype=np.int32)
    C, H, W = 4, 8, 8                                           # D = 256
    M = int(sum(int(n) * (int(n) + 1) // 2 for n in obj_num))   # 9

    roi_pooled_feats = jax.random.normal(key, (M, C, H, W), dtype=jnp.float32)
    feats_np = np.asarray(roi_pooled_feats)

    for isex in (True, False):
        out = object_pair_layer(roi_pooled_feats, obj_num, isex)
        out = jax.block_until_ready(out)
        ref = reference_object_pair(feats_np, obj_num, isex)
        assert out.shape == ref.shape, (out.shape, ref.shape)
        np.testing.assert_allclose(np.asarray(out), ref, rtol=0, atol=0)

    print("KERNEL_OK")
</pallas_src>

<mosaic_0001>
module attributes {stable_mosaic.version = 11 : i64} {
  func.func @kernel(%arg0: i32, %arg1: memref<12xi32, #tpu.memory_space<smem>>, %arg2: memref<9x256xf32, #tpu.memory_space<any>>, %arg3: memref<24x256xf32, #tpu.memory_space<vmem>>, %arg4: memref<!tpu.dma_semaphore, #tpu.memory_space<semaphore_mem>>) attributes {dimension_semantics = [#tpu.dimension_semantics<parallel>], iteration_bounds = array<i64: 1>, scalar_prefetch = 1 : i64, scratch_operands = 1 : i64, tpu.core_type = #tpu.core_type<tc>, window_params = [{}, {transform_indices = @transform_1, window_bounds = array<i64: 24, 256>}]} {
    %c12_i32 = arith.constant 12 : i32
    %0 = arith.muli %c12_i32, %arg0 : i32
    %c0_i32 = arith.constant 0 : i32
    %1 = arith.addi %0, %c0_i32 : i32
    %c0_i32_0 = arith.constant 0 : i32
    %2 = arith.addi %1, %c0_i32_0 : i32
    %3 = arith.index_cast %2 : i32 to index
    %4 = memref.load %arg1[%3] : memref<12xi32, #tpu.memory_space<smem>>
    %c0_i32_1 = arith.constant 0 : i32
    %5 = tpu.memref_slice %arg2[%4, %c0_i32_1] : memref<9x256xf32, #tpu.memory_space<any>> -> memref<1x256xf32, #tpu.memory_space<any>>
    %c0_i32_2 = arith.constant 0 : i32
    %c0_i32_3 = arith.constant 0 : i32
    %6 = tpu.memref_slice %arg3[%c0_i32_2, %c0_i32_3] : memref<24x256xf32, #tpu.memory_space<vmem>> -> memref<1x256xf32, #tpu.memory_space<vmem>>
    tpu.enqueue_dma source(%5 : memref<1x256xf32, #tpu.memory_space<any>>) target(%6 : memref<1x256xf32, #tpu.memory_space<vmem>>) target_semaphore(%arg4 : memref<!tpu.dma_semaphore, #tpu.memory_space<semaphore_mem>>)
    %c0_i32_4 = arith.constant 0 : i32
    %7 = arith.addi %0, %c0_i32_4 : i32
    %c1_i32 = arith.constant 1 : i32
    %8 = arith.addi %7, %c1_i32 : i32
    %9 = arith.index_cast %8 : i32 to index
    %10 = memref.load %arg1[%9] : memref<12xi32, #tpu.memory_space<smem>>
    %c0_i32_5 = arith.constant 0 : i32
    %11 = tpu.memref_slice %arg2[%10, %c0_i32_5] : memref<9x256xf32, #tpu.memory_space<any>> -> memref<1x256xf32, #tpu.memory_space<any>>
    %c1_i32_6 = arith.constant 1 : i32
    %c0_i32_7 = arith.constant 0 : i32
    %12 = tpu.memref_slice %arg3[%c1_i32_6, %c0_i32_7] : memref<24x256xf32, #tpu.memory_space<vmem>> -> memref<1x256xf32, #tpu.memory_space<vmem>>
    tpu.enqueue_dma source(%11 : memref<1x256xf32, #tpu.memory_space<any>>) target(%12 : memref<1x256xf32, #tpu.memory_space<vmem>>) target_semaphore(%arg4 : memref<!tpu.dma_semaphore, #tpu.memory_space<semaphore_mem>>)
    %c0_i32_8 = arith.constant 0 : i32
    %13 = arith.addi %0, %c0_i32_8 : i32
    %c2_i32 = arith.constant 2 : i32
    %14 = arith.addi %13, %c2_i32 : i32
    %15 = arith.index_cast %14 : i32 to index
    %16 = memref.load %arg1[%15] : memref<12xi32, #tpu.memory_space<smem>>
    %c0_i32_9 = arith.constant 0 : i32
    %17 = tpu.memref_slice %arg2[%16, %c0_i32_9] : memref<9x256xf32, #tpu.memory_space<any>> -> memref<1x256xf32, #tpu.memory_space<any>>
    %c2_i32_10 = arith.constant 2 : i32
    %c0_i32_11 = arith.constant 0 : i32
    %18 = tpu.memref_slice %arg3[%c2_i32_10, %c0_i32_11] : memref<24x256xf32, #tpu.memory_space<vmem>> -> memref<1x256xf32, #tpu.memory_space<vmem>>
    tpu.enqueue_dma source(%17 : memref<1x256xf32, #tpu.memory_space<any>>) target(%18 : memref<1x256xf32, #tpu.memory_space<vmem>>) target_semaphore(%arg4 : memref<!tpu.dma_semaphore, #tpu.memory_space<semaphore_mem>>)
    %c3_i32 = arith.constant 3 : i32
    %19 = arith.addi %0, %c3_i32 : i32
    %c0_i32_12 = arith.constant 0 : i32
    %20 = arith.addi %19, %c0_i32_12 : i32
    %21 = arith.index_cast %20 : i32 to index
    %22 = memref.load %arg1[%21] : memref<12xi32, #tpu.memory_space<smem>>
    %c0_i32_13 = arith.constant 0 : i32
    %23 = tpu.memref_slice %arg2[%22, %c0_i32_13] : memref<9x256xf32, #tpu.memory_space<any>> -> memref<1x256xf32, #tpu.memory_space<any>>
    %c6_i32 = arith.constant 6 : i32
    %c0_i32_14 = arith.constant 0 : i32
    %24 = tpu.memref_slice %arg3[%c6_i32, %c0_i32_14] : memref<24x256xf32, #tpu.memory_space<vmem>> -> memref<1x256xf32, #tpu.memory_space<vmem>>
    tpu.enqueue_dma source(%23 : memref<1x256xf32, #tpu.memory_space<any>>) target(%24 : memref<1x256xf32, #tpu.memory_space<vmem>>) target_semaphore(%arg4 : memref<!tpu.dma_semaphore, #tpu.memory_space<semaphore_mem>>)
    %c3_i32_15 = arith.constant 3 : i32
    %25 = arith.addi %0, %c3_i32_15 : i32
    %c1_i32_16 = arith.constant 1 : i32
    %26 = arith.addi %25, %c1_i32_16 : i32
    %27 = arith.index_cast %26 : i32 to index
    %28 = memref.load %arg1[%27] : memref<12xi32, #tpu.memory_space<smem>>
    %c0_i32_17 = arith.constant 0 : i32
    %29 = tpu.memref_slice %arg2[%28, %c0_i32_17] : memref<9x256xf32, #tpu.memory_space<any>> -> memref<1x256xf32, #tpu.memory_space<any>>
    %c7_i32 = arith.constant 7 : i32
    %c0_i32_18 = arith.constant 0 : i32
    %30 = tpu.memref_slice %arg3[%c7_i32, %c0_i32_18] : memref<24x256xf32, #tpu.memory_space<vmem>> -> memref<1x256xf32, #tpu.memory_space<vmem>>
    tpu.enqueue_dma source(%29 : memref<1x256xf32, #tpu.memory_space<any>>) target(%30 : memref<1x256xf32, #tpu.memory_space<vmem>>) target_semaphore(%arg4 : memref<!tpu.dma_semaphore, #tpu.memory_space<semaphore_mem>>)
    %c3_i32_19 = arith.constant 3 : i32
    %31 = arith.addi %0, %c3_i32_19 : i32
    %c2_i32_20 = arith.constant 2 : i32
    %32 = arith.addi %31, %c2_i32_20 : i32
    %33 = arith.index_cast %32 : i32 to index
    %34 = memref.load %arg1[%33] : memref<12xi32, #tpu.memory_space<smem>>
    %c0_i32_21 = arith.constant 0 : i32
    %35 = tpu.memref_slice %arg2[%34, %c0_i32_21] : memref<9x256xf32, #tpu.memory_space<any>> -> memref<1x256xf32, #tpu.memory_space<any>>
    %c8_i32 = arith.constant 8 : i32
    %c0_i32_22 = arith.constant 0 : i32
    %36 = tpu.memref_slice %arg3[%c8_i32, %c0_i32_22] : memref<24x256xf32, #tpu.memory_space<vmem>> -> memref<1x256xf32, #tpu.memory_space<vmem>>
    tpu.enqueue_dma source(%35 : memref<1x256xf32, #tpu.memory_space<any>>) target(%36 : memref<1x256xf32, #tpu.memory_space<vmem>>) target_semaphore(%arg4 : memref<!tpu.dma_semaphore, #tpu.memory_space<semaphore_mem>>)
    %c6_i32_23 = arith.constant 6 : i32
    %37 = arith.addi %0, %c6_i32_23 : i32
    %c0_i32_24 = arith.constant 0 : i32
    %38 = arith.addi %37, %c0_i32_24 : i32
    %39 = arith.index_cast %38 : i32 to index
    %40 = memref.load %arg1[%39] : memref<12xi32, #tpu.memory_space<smem>>
    %c0_i32_25 = arith.constant 0 : i32
    %41 = tpu.memref_slice %arg2[%40, %c0_i32_25] : memref<9x256xf32, #tpu.memory_space<any>> -> memref<1x256xf32, #tpu.memory_space<any>>
    %c12_i32_26 = arith.constant 12 : i32
    %c0_i32_27 = arith.constant 0 : i32
    %42 = tpu.memref_slice %arg3[%c12_i32_26, %c0_i32_27] : memref<24x256xf32, #tpu.memory_space<vmem>> -> memref<1x256xf32, #tpu.memory_space<vmem>>
    tpu.enqueue_dma source(%41 : memref<1x256xf32, #tpu.memory_space<any>>) target(%42 : memref<1x256xf32, #tpu.memory_space<vmem>>) target_semaphore(%arg4 : memref<!tpu.dma_semaphore, #tpu.memory_space<semaphore_mem>>)
    %c6_i32_28 = arith.constant 6 : i32
    %43 = arith.addi %0, %c6_i32_28 : i32
    %c1_i32_29 = arith.constant 1 : i32
    %44 = arith.addi %43, %c1_i32_29 : i32
    %45 = arith.index_cast %44 : i32 to index
    %46 = memref.load %arg1[%45] : memref<12xi32, #tpu.memory_space<smem>>
    %c0_i32_30 = arith.constant 0 : i32
    %47 = tpu.memref_slice %arg2[%46, %c0_i32_30] : memref<9x256xf32, #tpu.memory_space<any>> -> memref<1x256xf32, #tpu.memory_space<any>>
    %c13_i32 = arith.constant 13 : i32
    %c0_i32_31 = arith.constant 0 : i32
    %48 = tpu.memref_slice %arg3[%c13_i32, %c0_i32_31] : memref<24x256xf32, #tpu.memory_space<vmem>> -> memref<1x256xf32, #tpu.memory_space<vmem>>
    tpu.enqueue_dma source(%47 : memref<1x256xf32, #tpu.memory_space<any>>) target(%48 : memref<1x256xf32, #tpu.memory_space<vmem>>) target_semaphore(%arg4 : memref<!tpu.dma_semaphore, #tpu.memory_space<semaphore_mem>>)
    %c6_i32_32 = arith.constant 6 : i32
    %49 = arith.addi %0, %c6_i32_32 : i32
    %c2_i32_33 = arith.constant 2 : i32
    %50 = arith.addi %49, %c2_i32_33 : i32
    %51 = arith.index_cast %50 : i32 to index
    %52 = memref.load %arg1[%51] : memref<12xi32, #tpu.memory_space<smem>>
    %c0_i32_34 = arith.constant 0 : i32
    %53 = tpu.memref_slice %arg2[%52, %c0_i32_34] : memref<9x256xf32, #tpu.memory_space<any>> -> memref<1x256xf32, #tpu.memory_space<any>>
    %c14_i32 = arith.constant 14 : i32
    %c0_i32_35 = arith.constant 0 : i32
    %54 = tpu.memref_slice %arg3[%c14_i32, %c0_i32_35] : memref<24x256xf32, #tpu.memory_space<vmem>> -> memref<1x256xf32, #tpu.memory_space<vmem>>
    tpu.enqueue_dma source(%53 : memref<1x256xf32, #tpu.memory_space<any>>) target(%54 : memref<1x256xf32, #tpu.memory_space<vmem>>) target_semaphore(%arg4 : memref<!tpu.dma_semaphore, #tpu.memory_space<semaphore_mem>>)
    %c9_i32 = arith.constant 9 : i32
    %55 = arith.addi %0, %c9_i32 : i32
    %c0_i32_36 = arith.constant 0 : i32
    %56 = arith.addi %55, %c0_i32_36 : i32
    %57 = arith.index_cast %56 : i32 to index
    %58 = memref.load %arg1[%57] : memref<12xi32, #tpu.memory_space<smem>>
    %c0_i32_37 = arith.constant 0 : i32
    %59 = tpu.memref_slice %arg2[%58, %c0_i32_37] : memref<9x256xf32, #tpu.memory_space<any>> -> memref<1x256xf32, #tpu.memory_space<any>>
    %c18_i32 = arith.constant 18 : i32
    %c0_i32_38 = arith.constant 0 : i32
    %60 = tpu.memref_slice %arg3[%c18_i32, %c0_i32_38] : memref<24x256xf32, #tpu.memory_space<vmem>> -> memref<1x256xf32, #tpu.memory_space<vmem>>
    tpu.enqueue_dma source(%59 : memref<1x256xf32, #tpu.memory_space<any>>) target(%60 : memref<1x256xf32, #tpu.memory_space<vmem>>) target_semaphore(%arg4 : memref<!tpu.dma_semaphore, #tpu.memory_space<semaphore_mem>>)
    %c9_i32_39 = arith.constant 9 : i32
    %61 = arith.addi %0, %c9_i32_39 : i32
    %c1_i32_40 = arith.constant 1 : i32
    %62 = arith.addi %61, %c1_i32_40 : i32
    %63 = arith.index_cast %62 : i32 to index
    %64 = memref.load %arg1[%63] : memref<12xi32, #tpu.memory_space<smem>>
    %c0_i32_41 = arith.constant 0 : i32
    %65 = tpu.memref_slice %arg2[%64, %c0_i32_41] : memref<9x256xf32, #tpu.memory_space<any>> -> memref<1x256xf32, #tpu.memory_space<any>>
    %c19_i32 = arith.constant 19 : i32
    %c0_i32_42 = arith.constant 0 : i32
    %66 = tpu.memref_slice %arg3[%c19_i32, %c0_i32_42] : memref<24x256xf32, #tpu.memory_space<vmem>> -> memref<1x256xf32, #tpu.memory_space<vmem>>
    tpu.enqueue_dma source(%65 : memref<1x256xf32, #tpu.memory_space<any>>) target(%66 : memref<1x256xf32, #tpu.memory_space<vmem>>) target_semaphore(%arg4 : memref<!tpu.dma_semaphore, #tpu.memory_space<semaphore_mem>>)
    %c9_i32_43 = arith.constant 9 : i32
    %67 = arith.addi %0, %c9_i32_43 : i32
    %c2_i32_44 = arith.constant 2 : i32
    %68 = arith.addi %67, %c2_i32_44 : i32
    %69 = arith.index_cast %68 : i32 to index
    %70 = memref.load %arg1[%69] : memref<12xi32, #tpu.memory_space<smem>>
    %c0_i32_45 = arith.constant 0 : i32
    %71 = tpu.memref_slice %arg2[%70, %c0_i32_45] : memref<9x256xf32, #tpu.memory_space<any>> -> memref<1x256xf32, #tpu.memory_space<any>>
    %c20_i32 = arith.constant 20 : i32
    %c0_i32_46 = arith.constant 0 : i32
    %72 = tpu.memref_slice %arg3[%c20_i32, %c0_i32_46] : memref<24x256xf32, #tpu.memory_space<vmem>> -> memref<1x256xf32, #tpu.memory_space<vmem>>
    tpu.enqueue_dma source(%71 : memref<1x256xf32, #tpu.memory_space<any>>) target(%72 : memref<1x256xf32, #tpu.memory_space<vmem>>) target_semaphore(%arg4 : memref<!tpu.dma_semaphore, #tpu.memory_space<semaphore_mem>>)
    %c0_i32_47 = arith.constant 0 : i32
    %73 = tpu.memref_slice %arg2[%4, %c0_i32_47] : memref<9x256xf32, #tpu.memory_space<any>> -> memref<1x256xf32, #tpu.memory_space<any>>
    %c0_i32_48 = arith.constant 0 : i32
    %c0_i32_49 = arith.constant 0 : i32
    %74 = tpu.memref_slice %arg3[%c0_i32_48, %c0_i32_49] : memref<24x256xf32, #tpu.memory_space<vmem>> -> memref<1x256xf32, #tpu.memory_space<vmem>>
    tpu.wait_dma2 semaphore(%arg4 : memref<!tpu.dma_semaphore, #tpu.memory_space<semaphore_mem>>) src(%73 : memref<1x256xf32, #tpu.memory_space<any>>) dst(%74 : memref<1x256xf32, #tpu.memory_space<vmem>>)
    %c0_i32_50 = arith.constant 0 : i32
    %75 = tpu.memref_slice %arg2[%10, %c0_i32_50] : memref<9x256xf32, #tpu.memory_space<any>> -> memref<1x256xf32, #tpu.memory_space<any>>
    %c1_i32_51 = arith.constant 1 : i32
    %c0_i32_52 = arith.constant 0 : i32
    %76 = tpu.memref_slice %arg3[%c1_i32_51, %c0_i32_52] : memref<24x256xf32, #tpu.memory_space<vmem>> -> memref<1x256xf32, #tpu.memory_space<vmem>>
    tpu.wait_dma2 semaphore(%arg4 : memref<!tpu.dma_semaphore, #tpu.memory_space<semaphore_mem>>) src(%75 : memref<1x256xf32, #tpu.memory_space<any>>) dst(%76 : memref<1x256xf32, #tpu.memory_space<vmem>>)
    %c0_i32_53 = arith.constant 0 : i32
    %77 = tpu.memref_slice %arg2[%16, %c0_i32_53] : memref<9x256xf32, #tpu.memory_space<any>> -> memref<1x256xf32, #tpu.memory_space<any>>
    %c2_i32_54 = arith.constant 2 : i32
    %c0_i32_55 = arith.constant 0 : i32
    %78 = tpu.memref_slice %arg3[%c2_i32_54, %c0_i32_55] : memref<24x256xf32, #tpu.memory_space<vmem>> -> memref<1x256xf32, #tpu.memory_space<vmem>>
    tpu.wait_dma2 semaphore(%arg4 : memref<!tpu.dma_semaphore, #tpu.memory_space<semaphore_mem>>) src(%77 : memref<1x256xf32, #tpu.memory_space<any>>) dst(%78 : memref<1x256xf32, #tpu.memory_space<vmem>>)
    %c0_i32_56 = arith.constant 0 : i32
    %79 = tpu.memref_slice %arg2[%22, %c0_i32_56] : memref<9x256xf32, #tpu.memory_space<any>> -> memref<1x256xf32, #tpu.memory_space<any>>
    %c6_i32_57 = arith.constant 6 : i32
    %c0_i32_58 = arith.constant 0 : i32
    %80 = tpu.memref_slice %arg3[%c6_i32_57, %c0_i32_58] : memref<24x256xf32, #tpu.memory_space<vmem>> -> memref<1x256xf32, #tpu.memory_space<vmem>>
    tpu.wait_dma2 semaphore(%arg4 : memref<!tpu.dma_semaphore, #tpu.memory_space<semaphore_mem>>) src(%79 : memref<1x256xf32, #tpu.memory_space<any>>) dst(%80 : memref<1x256xf32, #tpu.memory_space<vmem>>)
    %c0_i32_59 = arith.constant 0 : i32
    %81 = tpu.memref_slice %arg2[%28, %c0_i32_59] : memref<9x256xf32, #tpu.memory_space<any>> -> memref<1x256xf32, #tpu.memory_space<any>>
    %c7_i32_60 = arith.constant 7 : i32
    %c0_i32_61 = arith.constant 0 : i32
    %82 = tpu.memref_slice %arg3[%c7_i32_60, %c0_i32_61] : memref<24x256xf32, #tpu.memory_space<vmem>> -> memref<1x256xf32, #tpu.memory_space<vmem>>
    tpu.wait_dma2 semaphore(%arg4 : memref<!tpu.dma_semaphore, #tpu.memory_space<semaphore_mem>>) src(%81 : memref<1x256xf32, #tpu.memory_space<any>>) dst(%82 : memref<1x256xf32, #tpu.memory_space<vmem>>)
    %c0_i32_62 = arith.constant 0 : i32
    %83 = tpu.memref_slice %arg2[%34, %c0_i32_62] : memref<9x256xf32, #tpu.memory_space<any>> -> memref<1x256xf32, #tpu.memory_space<any>>
    %c8_i32_63 = arith.constant 8 : i32
    %c0_i32_64 = arith.constant 0 : i32
    %84 = tpu.memref_slice %arg3[%c8_i32_63, %c0_i32_64] : memref<24x256xf32, #tpu.memory_space<vmem>> -> memref<1x256xf32, #tpu.memory_space<vmem>>
    tpu.wait_dma2 semaphore(%arg4 : memref<!tpu.dma_semaphore, #tpu.memory_space<semaphore_mem>>) src(%83 : memref<1x256xf32, #tpu.memory_space<any>>) dst(%84 : memref<1x256xf32, #tpu.memory_space<vmem>>)
    %c0_i32_65 = arith.constant 0 : i32
    %85 = tpu.memref_slice %arg2[%40, %c0_i32_65] : memref<9x256xf32, #tpu.memory_space<any>> -> memref<1x256xf32, #tpu.memory_space<any>>
    %c12_i32_66 = arith.constant 12 : i32
    %c0_i32_67 = arith.constant 0 : i32
    %86 = tpu.memref_slice %arg3[%c12_i32_66, %c0_i32_67] : memref<24x256xf32, #tpu.memory_space<vmem>> -> memref<1x256xf32, #tpu.memory_space<vmem>>
    tpu.wait_dma2 semaphore(%arg4 : memref<!tpu.dma_semaphore, #tpu.memory_space<semaphore_mem>>) src(%85 : memref<1x256xf32, #tpu.memory_space<any>>) dst(%86 : memref<1x256xf32, #tpu.memory_space<vmem>>)
    %c0_i32_68 = arith.constant 0 : i32
    %87 = tpu.memref_slice %arg2[%46, %c0_i32_68] : memref<9x256xf32, #tpu.memory_space<any>> -> memref<1x256xf32, #tpu.memory_space<any>>
    %c13_i32_69 = arith.constant 13 : i32
    %c0_i32_70 = arith.constant 0 : i32
    %88 = tpu.memref_slice %arg3[%c13_i32_69, %c0_i32_70] : memref<24x256xf32, #tpu.memory_space<vmem>> -> memref<1x256xf32, #tpu.memory_space<vmem>>
    tpu.wait_dma2 semaphore(%arg4 : memref<!tpu.dma_semaphore, #tpu.memory_space<semaphore_mem>>) src(%87 : memref<1x256xf32, #tpu.memory_space<any>>) dst(%88 : memref<1x256xf32, #tpu.memory_space<vmem>>)
    %c0_i32_71 = arith.constant 0 : i32
    %89 = tpu.memref_slice %arg2[%52, %c0_i32_71] : memref<9x256xf32, #tpu.memory_space<any>> -> memref<1x256xf32, #tpu.memory_space<any>>
    %c14_i32_72 = arith.constant 14 : i32
    %c0_i32_73 = arith.constant 0 : i32
    %90 = tpu.memref_slice %arg3[%c14_i32_72, %c0_i32_73] : memref<24x256xf32, #tpu.memory_space<vmem>> -> memref<1x256xf32, #tpu.memory_space<vmem>>
    tpu.wait_dma2 semaphore(%arg4 : memref<!tpu.dma_semaphore, #tpu.memory_space<semaphore_mem>>) src(%89 : memref<1x256xf32, #tpu.memory_space<any>>) dst(%90 : memref<1x256xf32, #tpu.memory_space<vmem>>)
    %c0_i32_74 = arith.constant 0 : i32
    %91 = tpu.memref_slice %arg2[%58, %c0_i32_74] : memref<9x256xf32, #tpu.memory_space<any>> -> memref<1x256xf32, #tpu.memory_space<any>>
    %c18_i32_75 = arith.constant 18 : i32
    %c0_i32_76 = arith.constant 0 : i32
    %92 = tpu.memref_slice %arg3[%c18_i32_75, %c0_i32_76] : memref<24x256xf32, #tpu.memory_space<vmem>> -> memref<1x256xf32, #tpu.memory_space<vmem>>
    tpu.wait_dma2 semaphore(%arg4 : memref<!tpu.dma_semaphore, #tpu.memory_space<semaphore_mem>>) src(%91 : memref<1x256xf32, #tpu.memory_space<any>>) dst(%92 : memref<1x256xf32, #tpu.memory_space<vmem>>)
    %c0_i32_77 = arith.constant 0 : i32
    %93 = tpu.memref_slice %arg2[%64, %c0_i32_77] : memref<9x256xf32, #tpu.memory_space<any>> -> memref<1x256xf32, #tpu.memory_space<any>>
    %c19_i32_78 = arith.constant 19 : i32
    %c0_i32_79 = arith.constant 0 : i32
    %94 = tpu.memref_slice %arg3[%c19_i32_78, %c0_i32_79] : memref<24x256xf32, #tpu.memory_space<vmem>> -> memref<1x256xf32, #tpu.memory_space<vmem>>
    tpu.wait_dma2 semaphore(%arg4 : memref<!tpu.dma_semaphore, #tpu.memory_space<semaphore_mem>>) src(%93 : memref<1x256xf32, #tpu.memory_space<any>>) dst(%94 : memref<1x256xf32, #tpu.memory_space<vmem>>)
    %c0_i32_80 = arith.constant 0 : i32
    %95 = tpu.memref_slice %arg2[%70, %c0_i32_80] : memref<9x256xf32, #tpu.memory_space<any>> -> memref<1x256xf32, #tpu.memory_space<any>>
    %c20_i32_81 = arith.constant 20 : i32
    %c0_i32_82 = arith.constant 0 : i32
    %96 = tpu.memref_slice %arg3[%c20_i32_81, %c0_i32_82] : memref<24x256xf32, #tpu.memory_space<vmem>> -> memref<1x256xf32, #tpu.memory_space<vmem>>
    tpu.wait_dma2 semaphore(%arg4 : memref<!tpu.dma_semaphore, #tpu.memory_space<semaphore_mem>>) src(%95 : memref<1x256xf32, #tpu.memory_space<any>>) dst(%96 : memref<1x256xf32, #tpu.memory_space<vmem>>)
    %c1 = arith.constant 1 : index
    %c0 = arith.constant 0 : index
    %97 = vector.load %arg3[%c1, %c0] : memref<24x256xf32, #tpu.memory_space<vmem>>, vector<1x256xf32>
    %c3 = arith.constant 3 : index
    %c0_83 = arith.constant 0 : index
    %98 = vector.load %arg3[%c3, %c0_83] : memref<24x256xf32, #tpu.memory_space<vmem>>, vector<1x256xf32>
    tpu.vector_store %arg3[%c3, %c0_83], %97 {strides = array<i32>} : memref<24x256xf32, #tpu.memory_space<vmem>>, vector<1x256xf32>,
    %c0_84 = arith.constant 0 : index
    %c0_85 = arith.constant 0 : index
    %99 = vector.load %arg3[%c0_84, %c0_85] : memref<24x256xf32, #tpu.memory_space<vmem>>, vector<1x256xf32>
    %c4 = arith.constant 4 : index
    %c0_86 = arith.constant 0 : index
    %100 = vector.load %arg3[%c4, %c0_86] : memref<24x256xf32, #tpu.memory_space<vmem>>, vector<1x256xf32>
    tpu.vector_store %arg3[%c4, %c0_86], %99 {strides = array<i32>} : memref<24x256xf32, #tpu.memory_space<vmem>>, vector<1x256xf32>,
    %c2 = arith.constant 2 : index
    %c0_87 = arith.constant 0 : index
    %101 = vector.load %arg3[%c2, %c0_87] : memref<24x256xf32, #tpu.memory_space<vmem>>, vector<1x256xf32>
    %c5 = arith.constant 5 : index
    %c0_88 = arith.constant 0 : index
    %102 = vector.load %arg3[%c5, %c0_88] : memref<24x256xf32, #tpu.memory_space<vmem>>, vector<1x256xf32>
    tpu.vector_store %arg3[%c5, %c0_88], %101 {strides = array<i32>} : memref<24x256xf32, #tpu.memory_space<vmem>>, vector<1x256xf32>,
    %c7 = arith.constant 7 : index
    %c0_89 = arith.constant 0 : index
    %103 = vector.load %arg3[%c7, %c0_89] : memref<24x256xf32, #tpu.memory_space<vmem>>, vector<1x256xf32>
    %c9 = arith.constant 9 : index
    %c0_90 = arith.constant 0 : index
    %104 = vector.load %arg3[%c9, %c0_90] : memref<24x256xf32, #tpu.memory_space<vmem>>, vector<1x256xf32>
    tpu.vector_store %arg3[%c9, %c0_90], %103 {strides = array<i32>} : memref<24x256xf32, #tpu.memory_space<vmem>>, vector<1x256xf32>,
    %c6 = arith.constant 6 : index
    %c0_91 = arith.constant 0 : index
    %105 = vector.load %arg3[%c6, %c0_91] : memref<24x256xf32, #tpu.memory_space<vmem>>, vector<1x256xf32>
    %c10 = arith.constant 10 : index
    %c0_92 = arith.constant 0 : index
    %106 = vector.load %arg3[%c10, %c0_92] : memref<24x256xf32, #tpu.memory_space<vmem>>, vector<1x256xf32>
    tpu.vector_store %arg3[%c10, %c0_92], %105 {strides = array<i32>} : memref<24x256xf32, #tpu.memory_space<vmem>>, vector<1x256xf32>,
    %c8 = arith.constant 8 : index
    %c0_93 = arith.constant 0 : index
    %107 = vector.load %arg3[%c8, %c0_93] : memref<24x256xf32, #tpu.memory_space<vmem>>, vector<1x256xf32>
    %c11 = arith.constant 11 : index
    %c0_94 = arith.constant 0 : index
    %108 = vector.load %arg3[%c11, %c0_94] : memref<24x256xf32, #tpu.memory_space<vmem>>, vector<1x256xf32>
    tpu.vector_store %arg3[%c11, %c0_94], %107 {strides = array<i32>} : memref<24x256xf32, #tpu.memory_space<vmem>>, vector<1x256xf32>,
    %c13 = arith.constant 13 : index
    %c0_95 = arith.constant 0 : index
    %109 = vector.load %arg3[%c13, %c0_95] : memref<24x256xf32, #tpu.memory_space<vmem>>, vector<1x256xf32>
    %c15 = arith.constant 15 : index
    %c0_96 = arith.constant 0 : index
    %110 = vector.load %arg3[%c15, %c0_96] : memref<24x256xf32, #tpu.memory_space<vmem>>, vector<1x256xf32>
    tpu.vector_store %arg3[%c15, %c0_96], %109 {strides = array<i32>} : memref<24x256xf32, #tpu.memory_space<vmem>>, vector<1x256xf32>,
    %c12 = arith.constant 12 : index
    %c0_97 = arith.constant 0 : index
    %111 = vector.load %arg3[%c12, %c0_97] : memref<24x256xf32, #tpu.memory_space<vmem>>, vector<1x256xf32>
    %c16 = arith.constant 16 : index
    %c0_98 = arith.constant 0 : index
    %112 = vector.load %arg3[%c16, %c0_98] : memref<24x256xf32, #tpu.memory_space<vmem>>, vector<1x256xf32>
    tpu.vector_store %arg3[%c16, %c0_98], %111 {strides = array<i32>} : memref<24x256xf32, #tpu.memory_space<vmem>>, vector<1x256xf32>,
    %c14 = arith.constant 14 : index
    %c0_99 = arith.constant 0 : index
    %113 = vector.load %arg3[%c14, %c0_99] : memref<24x256xf32, #tpu.memory_space<vmem>>, vector<1x256xf32>
    %c17 = arith.constant 17 : index
    %c0_100 = arith.constant 0 : index
    %114 = vector.load %arg3[%c17, %c0_100] : memref<24x256xf32, #tpu.memory_space<vmem>>, vector<1x256xf32>
    tpu.vector_store %arg3[%c17, %c0_100], %113 {strides = array<i32>} : memref<24x256xf32, #tpu.memory_space<vmem>>, vector<1x256xf32>,
    %c19 = arith.constant 19 : index
    %c0_101 = arith.constant 0 : index
    %115 = vector.load %arg3[%c19, %c0_101] : memref<24x256xf32, #tpu.memory_space<vmem>>, vector<1x256xf32>
    %c21 = arith.constant 21 : index
    %c0_102 = arith.constant 0 : index
    %116 = vector.load %arg3[%c21, %c0_102] : memref<24x256xf32, #tpu.memory_space<vmem>>, vector<1x256xf32>
    tpu.vector_store %arg3[%c21, %c0_102], %115 {strides = array<i32>} : memref<24x256xf32, #tpu.memory_space<vmem>>, vector<1x256xf32>,
    %c18 = arith.constant 18 : index
    %c0_103 = arith.constant 0 : index
    %117 = vector.load %arg3[%c18, %c0_103] : memref<24x256xf32, #tpu.memory_space<vmem>>, vector<1x256xf32>
    %c22 = arith.constant 22 : index
    %c0_104 = arith.constant 0 : index
    %118 = vector.load %arg3[%c22, %c0_104] : memref<24x256xf32, #tpu.memory_space<vmem>>, vector<1x256xf32>
    tpu.vector_store %arg3[%c22, %c0_104], %117 {strides = array<i32>} : memref<24x256xf32, #tpu.memory_space<vmem>>, vector<1x256xf32>,
    %c20 = arith.constant 20 : index
    %c0_105 = arith.constant 0 : index
    %119 = vector.load %arg3[%c20, %c0_105] : memref<24x256xf32, #tpu.memory_space<vmem>>, vector<1x256xf32>
    %c23 = arith.constant 23 : index
    %c0_106 = arith.constant 0 : index
    %120 = vector.load %arg3[%c23, %c0_106] : memref<24x256xf32, #tpu.memory_space<vmem>>, vector<1x256xf32>
    tpu.vector_store %arg3[%c23, %c0_106], %119 {strides = array<i32>} : memref<24x256xf32, #tpu.memory_space<vmem>>, vector<1x256xf32>,
    return
  }
  func.func @transform_1(%arg0: i32, %arg1: memref<12xi32, #tpu.memory_space<smem>>) -> (i32, i32) {
    %c0_i32 = arith.constant 0 : i32
    %c0_i32_0 = arith.constant 0 : i32
    return %arg0, %c0_i32 : i32, i32
  }
}

</mosaic_0001>

<llo_original>
// kernel: tpu_custom_call.1
$region0: #{tpu_custom_call.1}
  #allocation0 [shape = 'u32[]', space=smem, size = 0x4, offset = 0x4, fixed_abs, tag = 'smem constant byte address 0x4 - core index']
  #allocation1 [shape = 'u32[72,128]{1,0:T(1,128)}', space=vmem, size = 0x9000, scoped, tag = 'internal scratch']
  #allocation2 [shape = 's32[1]{0}', space=sflag, size = 0x4, scoped, tag = 'scratch operand']
  #allocation3 [shape = 's32[1]{0}', space=sflag, size = 0x4, scoped, tag = 'scoped memory for tpu_custom_call.1']
  #allocation4 [shape = 'u8[512]{0}', space=smem, size = 0x200, scoped, tag = 'prefetched SMEM operand 0']
  #allocation7 [shape = 's32[]', space=sflag, size = 0x4, offset = 0, fixed_abs, tag = 'sflag constant byte address 0x0 - dummy sync flag']
  #allocation8 [shape = 's32[]', space=sflag, size = 0x4, offset = 0, fixed_abs, tag = 'sflag constant byte address 0x0 - dummy sync flag']
  #allocation9 [shape = 's32[]', space=sflag, size = 0x4, offset = 0, fixed_abs, tag = 'sflag constant byte address 0x0 - dummy sync flag']
  #allocation10 [shape = 's32[]', space=sflag, size = 0x4, offset = 0, fixed_abs, tag = 'sflag constant byte address 0x0 - dummy sync flag']
  #allocation11 [shape = 's32[]', space=sflag, size = 0x4, offset = 0, fixed_abs, tag = 'sflag constant byte address 0x0 - dummy sync flag']
  #allocation12 [shape = 's32[]', space=sflag, size = 0x4, offset = 0, fixed_abs, tag = 'sflag constant byte address 0x0 - dummy sync flag']
  #allocation13 [shape = 's32[]', space=sflag, size = 0x4, offset = 0, fixed_abs, tag = 'sflag constant byte address 0x0 - dummy sync flag']
  #allocation14 [shape = 's32[]', space=sflag, size = 0x4, offset = 0, fixed_abs, tag = 'sflag constant byte address 0x0 - dummy sync flag']
  #allocation15 [shape = 's32[]', space=sflag, size = 0x4, offset = 0, fixed_abs, tag = 'sflag constant byte address 0x0 - dummy sync flag']
  #allocation16 [shape = 's32[]', space=sflag, size = 0x4, offset = 0, fixed_abs, tag = 'sflag constant byte address 0x0 - dummy sync flag']
  #allocation17 [shape = 's32[]', space=sflag, size = 0x4, offset = 0, fixed_abs, tag = 'sflag constant byte address 0x0 - dummy sync flag']
  #allocation18 [shape = 's32[]', space=sflag, size = 0x4, offset = 0, fixed_abs, tag = 'sflag constant byte address 0x0 - dummy sync flag']
  %s0 = inlined_call_operand.hbm [shape: s32[12], index: 0, kind: input, shape index: {}]
  %s1 = inlined_call_operand.hbm [shape: f32[9,256], index: 1, kind: input, shape index: {}]
  %s2 = inlined_call_operand.hbm [shape: f32[24,256], index: 2, kind: output, shape index: {}]
  %s3 = sld [smem:[#allocation0]]
  $region10: #{tpu_custom_call.1} parent=0
    _
  %s5 = ssub.s32 1, %s3
  %s6 = scalar_select 0, %s5, %s3
  %s8 = sshll.u32 %s0, 4
  %s9 = int_to_ptr.hbm [resolvable:$true] %s8
  %11 = dma.hbm_to_smem %s9, 16, [#allocation4], [#allocation3]
  %13 = dma.done [#allocation3], 16
  %14 = sfence
  $region1: #{tpu_custom_call.1} parent=0
    #allocation5 [shape = 'u8[24576]{0}', space=vmem, size = 0x6000, scoped, tag = 'output window, operand 0, single buffered']
    #allocation6 [shape = 's32[1]{0}', space=sflag, size = 0x4, scoped, tag = 'scoped memory for tpu_custom_call.1']
    %15 = vsyncpa [#allocation6], 0
    %s16 = smul.u32 0, 12
    %s17 = sld [smem:[#allocation4 + %s16]]
    %s18 = sshrl.u32 %s17, 3
    %s19 = sand.u32 %s17, 7
    %s20 = smul.u32 %s18, 16
    %s21 = sadd.s32 %s19, %s20
    %s22 = scalar_lea.hbm %s1, %s21
    %s23 = sshll.u32 %s22, 4
    %s24 = int_to_ptr.hbm [resolvable:$true] %s23
    %s25 = sshll.u32 [#allocation5], 4
    %s26 = int_to_ptr.vmem [resolvable:$true] %s25
    %30 = dma.hbm_to_vmem [thread:$0]  %s24, 32, %s26, [#allocation2], 128, 128, 1
    %s31 = sadd.s32 %s16, 1
    %s32 = sld [smem:[#allocation4 + %s31]]
    %s33 = sshrl.u32 %s32, 3
    %s34 = sand.u32 %s32, 7
    %s35 = smul.u32 %s33, 16
    %s36 = sadd.s32 %s34, %s35
    %s37 = scalar_lea.hbm %s1, %s36
    %s38 = scalar_lea.vmem [#allocation5], 1
    %s39 = sshll.u32 %s37, 4
    %s40 = int_to_ptr.hbm [resolvable:$true] %s39
    %s41 = sshll.u32 %s38, 4
    %s42 = int_to_ptr.vmem [resolvable:$true] %s41
    %46 = dma.hbm_to_vmem [thread:$0]  %s40, 32, %s42, [#allocation2], 128, 128, 1
    %s47 = sadd.s32 %s16, 2
    %s48 = sld [smem:[#allocation4 + %s47]]
    %s49 = sshrl.u32 %s48, 3
    %s50 = sand.u32 %s48, 7
    %s51 = smul.u32 %s49, 16
    %s52 = sadd.s32 %s50, %s51
    %s53 = scalar_lea.hbm %s1, %s52
    %s54 = scalar_lea.vmem [#allocation5], 2
    %s55 = sshll.u32 %s53, 4
    %s56 = int_to_ptr.hbm [resolvable:$true] %s55
    %s57 = sshll.u32 %s54, 4
    %s58 = int_to_ptr.vmem [resolvable:$true] %s57
    %62 = dma.hbm_to_vmem [thread:$0]  %s56, 32, %s58, [#allocation2], 128, 128, 1
    %s63 = sadd.s32 %s16, 3
    %s64 = sld [smem:[#allocation4 + %s63]]
    %s65 = sshrl.u32 %s64, 3
    %s66 = sand.u32 %s64, 7
    %s67 = smul.u32 %s65, 16
    %s68 = sadd.s32 %s66, %s67
    %s69 = scalar_lea.hbm %s1, %s68
    %s70 = scalar_lea.vmem [#allocation5], 6
    %s71 = sshll.u32 %s69, 4
    %s72 = int_to_ptr.hbm [resolvable:$true] %s71
    %s73 = sshll.u32 %s70, 4
    %s74 = int_to_ptr.vmem [resolvable:$true] %s73
    %78 = dma.hbm_to_vmem [thread:$0]  %s72, 32, %s74, [#allocation2], 128, 128, 1
    %s79 = sadd.s32 %s16, 4
    %s80 = sld [smem:[#allocation4 + %s79]]
    %s81 = sshrl.u32 %s80, 3
    %s82 = sand.u32 %s80, 7
    %s83 = smul.u32 %s81, 16
    %s84 = sadd.s32 %s82, %s83
    %s85 = scalar_lea.hbm %s1, %s84
    %s86 = scalar_lea.vmem [#allocation5], 7
    %s87 = sshll.u32 %s85, 4
    %s88 = int_to_ptr.hbm [resolvable:$true] %s87
    %s89 = sshll.u32 %s86, 4
    %s90 = int_to_ptr.vmem [resolvable:$true] %s89
    %94 = dma.hbm_to_vmem [thread:$0]  %s88, 32, %s90, [#allocation2], 128, 128, 1
    %s95 = sadd.s32 %s16, 5
    %s96 = sld [smem:[#allocation4 + %s95]]
    %s97 = sshrl.u32 %s96, 3
    %s98 = sand.u32 %s96, 7
    %s99 = smul.u32 %s97, 16
    %s100 = sadd.s32 %s98, %s99
    %s101 = scalar_lea.hbm %s1, %s100
    %s102 = scalar_lea.vmem [#allocation5], 16
    %s103 = sshll.u32 %s101, 4
    %s104 = int_to_ptr.hbm [resolvable:$true] %s103
    %s105 = sshll.u32 %s102, 4
    %s106 = int_to_ptr.vmem [resolvable:$true] %s105
    %110 = dma.hbm_to_vmem [thread:$0]  %s104, 32, %s106, [#allocation2], 128, 128, 1
    %s111 = sadd.s32 %s16, 6
    %s112 = sld [smem:[#allocation4 + %s111]]
    %s113 = sshrl.u32 %s112, 3
    %s114 = sand.u32 %s112, 7
    %s115 = smul.u32 %s113, 16
    %s116 = sadd.s32 %s114, %s115
    %s117 = scalar_lea.hbm %s1, %s116
    %s118 = scalar_lea.vmem [#allocation5], 20
    %s119 = sshll.u32 %s117, 4
    %s120 = int_to_ptr.hbm [resolvable:$true] %s119
    %s121 = sshll.u32 %s118, 4
    %s122 = int_to_ptr.vmem [resolvable:$true] %s121
    %126 = dma.hbm_to_vmem [thread:$0]  %s120, 32, %s122, [#allocation2], 128, 128, 1
    %s127 = sadd.s32 %s16, 7
    %s128 = sld [smem:[#allocation4 + %s127]]
    %s129 = sshrl.u32 %s128, 3
    %s130 = sand.u32 %s128, 7
    %s131 = smul.u32 %s129, 16
    %s132 = sadd.s32 %s130, %s131
    %s133 = scalar_lea.hbm %s1, %s132
    %s134 = scalar_lea.vmem [#allocation5], 21
    %s135 = sshll.u32 %s133, 4
    %s136 = int_to_ptr.hbm [resolvable:$true] %s135
    %s137 = sshll.u32 %s134, 4
    %s138 = int_to_ptr.vmem [resolvable:$true] %s137
    %142 = dma.hbm_to_vmem [thread:$0]  %s136, 32, %s138, [#allocation2], 128, 128, 1
    %s143 = sadd.s32 %s16, 8
    %s144 = sld [smem:[#allocation4 + %s143]]
    %s145 = sshrl.u32 %s144, 3
    %s146 = sand.u32 %s144, 7
    %s147 = smul.u32 %s145, 16
    %s148 = sadd.s32 %s146, %s147
    %s149 = scalar_lea.hbm %s1, %s148
    %s150 = scalar_lea.vmem [#allocation5], 22
    %s151 = sshll.u32 %s149, 4
    %s152 = int_to_ptr.hbm [resolvable:$true] %s151
    %s153 = sshll.u32 %s150, 4
    %s154 = int_to_ptr.vmem [resolvable:$true] %s153
    %158 = dma.hbm_to_vmem [thread:$0]  %s152, 32, %s154, [#allocation2], 128, 128, 1
    %s159 = sadd.s32 %s16, 9
    %s160 = sld [smem:[#allocation4 + %s159]]
    %s161 = sshrl.u32 %s160, 3
    %s162 = sand.u32 %s160, 7
    %s163 = smul.u32 %s161, 16
    %s164 = sadd.s32 %s162, %s163
    %s165 = scalar_lea.hbm %s1, %s164
    %s166 = scalar_lea.vmem [#allocation5], 34
    %s167 = sshll.u32 %s165, 4
    %s168 = int_to_ptr.hbm [resolvable:$true] %s167
    %s169 = sshll.u32 %s166, 4
    %s170 = int_to_ptr.vmem [resolvable:$true] %s169
    %174 = dma.hbm_to_vmem [thread:$0]  %s168, 32, %s170, [#allocation2], 128, 128, 1
    %s175 = sadd.s32 %s16, 10
    %s176 = sld [smem:[#allocation4 + %s175]]
    %s177 = sshrl.u32 %s176, 3
    %s178 = sand.u32 %s176, 7
    %s179 = smul.u32 %s177, 16
    %s180 = sadd.s32 %s178, %s179
    %s181 = scalar_lea.hbm %s1, %s180
    %s182 = scalar_lea.vmem [#allocation5], 35
    %s183 = sshll.u32 %s181, 4
    %s184 = int_to_ptr.hbm [resolvable:$true] %s183
    %s185 = sshll.u32 %s182, 4
    %s186 = int_to_ptr.vmem [resolvable:$true] %s185
    %190 = dma.hbm_to_vmem [thread:$0]  %s184, 32, %s186, [#allocation2], 128, 128, 1
    %s191 = sadd.s32 %s16, 11
    %s192 = sld [smem:[#allocation4 + %s191]]
    %s193 = sshrl.u32 %s192, 3
    %s194 = sand.u32 %s192, 7
    %s195 = smul.u32 %s193, 16
    %s196 = sadd.s32 %s194, %s195
    %s197 = scalar_lea.hbm %s1, %s196
    %s198 = scalar_lea.vmem [#allocation5], 36
    %s199 = sshll.u32 %s197, 4
    %s200 = int_to_ptr.hbm [resolvable:$true] %s199
    %s201 = sshll.u32 %s198, 4
    %s202 = int_to_ptr.vmem [resolvable:$true] %s201
    %206 = dma.hbm_to_vmem [thread:$0]  %s200, 32, %s202, [#allocation2], 128, 128, 1
    %s207 = smul.u32 1, 2
    %s208 = sshll.u32 %s207, 4
    %209 = dma.done [#allocation2], %s208
    %s210 = sshll.u32 %s207, 4
    %211 = dma.done [#allocation2], %s210
    %s212 = sshll.u32 %s207, 4
    %213 = dma.done [#allocation2], %s212
    %s214 = sshll.u32 %s207, 4
    %215 = dma.done [#allocation2], %s214
    %s216 = sshll.u32 %s207, 4
    %217 = dma.done [#allocation2], %s216
    %s218 = sshll.u32 %s207, 4
    %219 = dma.done [#allocation2], %s218
    %s220 = sshll.u32 %s207, 4
    %221 = dma.done [#allocation2], %s220
    %s222 = sshll.u32 %s207, 4
    %223 = dma.done [#allocation2], %s222
    %s224 = sshll.u32 %s207, 4
    %225 = dma.done [#allocation2], %s224
    %s226 = sshll.u32 %s207, 4
    %227 = dma.done [#allocation2], %s226
    %s228 = sshll.u32 %s207, 4
    %229 = dma.done [#allocation2], %s228
    %s230 = sshll.u32 %s207, 4
    %231 = dma.done [#allocation2], %s230
    %s232 = scalar_lea.vmem [#allocation5], 1
    %v233 = vld [vmem:[%s232] ss:$8 sm:$0x3]
    %v234 = vlaneseq
    %vm235 = vcmp.ge.s32.totalorder %v234, 0
    %vm236 = vcmp.lt.s32.totalorder %v234, 256
    %vm237 = vmand %vm235, %vm236
    %s238 = scalar_lea.vmem [#allocation5], 3
    %239 = vst.msk [vmem:[%s238] ss:$8 sm:$0x3] %vm237, %v233
    %240 = vst.msk [vmem:[%s238] ss:$8 sm:$0x0] %vm237, %v233
    %v241 = vld [vmem:[#allocation5] ss:$8 sm:$0x3]
    %s242 = scalar_lea.vmem [#allocation5], 4
    %243 = vst.msk [vmem:[%s242] ss:$8 sm:$0x3] %vm237, %v241
    %244 = vst.msk [vmem:[%s242] ss:$8 sm:$0x0] %vm237, %v241
    %s245 = scalar_lea.vmem [#allocation5], 2
    %v246 = vld [vmem:[%s245] ss:$8 sm:$0x3]
    %s247 = scalar_lea.vmem [#allocation5], 5
    %248 = vst.msk [vmem:[%s247] ss:$8 sm:$0x3] %vm237, %v246
    %249 = vst.msk [vmem:[%s247] ss:$8 sm:$0x0] %vm237, %v246
    %s250 = scalar_lea.vmem [#allocation5], 7
    %v251 = vld [vmem:[%s250] ss:$8 sm:$0x3]
    %s252 = scalar_lea.vmem [#allocation5], 17
    %253 = vst.msk [vmem:[%s252] ss:$8 sm:$0x3] %vm237, %v251
    %254 = vst.msk [vmem:[%s252] ss:$8 sm:$0x0] %vm237, %v251
    %s255 = scalar_lea.vmem [#allocation5], 6
    %v256 = vld [vmem:[%s255] ss:$8 sm:$0x3]
    %s257 = scalar_lea.vmem [#allocation5], 18
    %258 = vst.msk [vmem:[%s257] ss:$8 sm:$0x3] %vm237, %v256
    %259 = vst.msk [vmem:[%s257] ss:$8 sm:$0x0] %vm237, %v256
    %s260 = scalar_lea.vmem [#allocation5], 16
    %v261 = vld [vmem:[%s260] ss:$8 sm:$0x3]
    %s262 = scalar_lea.vmem [#allocation5], 19
    %263 = vst.msk [vmem:[%s262] ss:$8 sm:$0x3] %vm237, %v261
    %264 = vst.msk [vmem:[%s262] ss:$8 sm:$0x0] %vm237, %v261
    %s265 = scalar_lea.vmem [#allocation5], 21
    %v266 = vld [vmem:[%s265] ss:$8 sm:$0x3]
    %s267 = scalar_lea.vmem [#allocation5], 23
    %268 = vst.msk [vmem:[%s267] ss:$8 sm:$0x3] %vm237, %v266
    %269 = vst.msk [vmem:[%s267] ss:$8 sm:$0x0] %vm237, %v266
    %s270 = scalar_lea.vmem [#allocation5], 20
    %v271 = vld [vmem:[%s270] ss:$8 sm:$0x3]
    %s272 = scalar_lea.vmem [#allocation5], 32
    %273 = vst.msk [vmem:[%s272] ss:$8 sm:$0x3] %vm237, %v271
    %274 = vst.msk [vmem:[%s272] ss:$8 sm:$0x0] %vm237, %v271
    %s275 = scalar_lea.vmem [#allocation5], 22
    %v276 = vld [vmem:[%s275] ss:$8 sm:$0x3]
    %s277 = scalar_lea.vmem [#allocation5], 33
    %278 = vst.msk [vmem:[%s277] ss:$8 sm:$0x3] %vm237, %v276
    %279 = vst.msk [vmem:[%s277] ss:$8 sm:$0x0] %vm237, %v276
    %s280 = scalar_lea.vmem [#allocation5], 35
    %v281 = vld [vmem:[%s280] ss:$8 sm:$0x3]
    %s282 = scalar_lea.vmem [#allocation5], 37
    %283 = vst.msk [vmem:[%s282] ss:$8 sm:$0x3] %vm237, %v281
    %284 = vst.msk [vmem:[%s282] ss:$8 sm:$0x0] %vm237, %v281
    %s285 = scalar_lea.vmem [#allocation5], 34
    %v286 = vld [vmem:[%s285] ss:$8 sm:$0x3]
    %s287 = scalar_lea.vmem [#allocation5], 38
    %288 = vst.msk [vmem:[%s287] ss:$8 sm:$0x3] %vm237, %v286
    %289 = vst.msk [vmem:[%s287] ss:$8 sm:$0x0] %vm237, %v286
    %s290 = scalar_lea.vmem [#allocation5], 36
    %v291 = vld [vmem:[%s290] ss:$8 sm:$0x3]
    %s292 = scalar_lea.vmem [#allocation5], 39
    %293 = vst.msk [vmem:[%s292] ss:$8 sm:$0x3] %vm237, %v291
    %294 = vst.msk [vmem:[%s292] ss:$8 sm:$0x0] %vm237, %v291
    // Predicated region
    $region2: #{tpu_custom_call.1} parent=1 // pred_check
      _
    $region3: #{tpu_custom_call.1} parent=1 // pred_check_branch
      %296 = sbr.rel (0) target = $region5
    $region4: #{tpu_custom_call.1} parent=1 // pred_region
      %298 = vsyncadd [#allocation6], 0
      %s299 = sshll.u32 [#allocation5], 4
      %s300 = int_to_ptr.vmem [resolvable:$true] %s299
      %s301 = sshll.u32 %s2, 4
      %s302 = int_to_ptr.hbm [resolvable:$true] %s301
      %307 = dma.vmem_to_hbm [thread:$0]  %s300, 768, %s302, [#allocation6], 256, 256, 16
    $region5: #{tpu_custom_call.1} parent=1 // pred_fallthru
      _
    // Predicated region
    $region6: #{tpu_custom_call.1} parent=1 // pred_check
      _
    $region7: #{tpu_custom_call.1} parent=1 // pred_check_branch
      %309 = sbr.rel (0) target = $region9
    $region8: #{tpu_custom_call.1} parent=1 // pred_region
      %311 = dma.done [#allocation6], 768
    $region9: #{tpu_custom_call.1} parent=1 // pred_fallthru
      _
    %312 = vsyncpa [#allocation6], 1
  %313 = vsyncmov [#allocation2]
  %s314 = vpop.sfrf %313
  %p315 = scmp.eq.s32.totalorder %s314, 0
  %p316 = pneg %p315
  %318 = shalt.err (%p316)

</llo_original>
